<compile_context>
chip_gen: v5e
topology: v5e:2x2
jax: 0.10.0
libtpu: 0.0.40
codegen_flags: <defaults>
</compile_context>

<pallas_src>
import numpy as np
import jax
import jax.numpy as jnp
from jax.experimental import pallas as pl
from jax.experimental.pallas import tpu as pltpu

# ---- module hyper-parameters (deterministic, set in-script) -----------------
SAMPLE_RATE = 16000
N_FFT = 256
HOP = N_FFT // 2                 # torchaudio Spectrogram default: win_length // 2
N_FREQ = N_FFT // 2 + 1          # 129
N_MELS = 128                     # torchaudio MelSpectrogram default
F_MIN = 0.0
F_MAX = 8000.0
TOP_DB = 80.0
AMIN = 1e-10                     # torchaudio amplitude_to_DB default
# db_multiplier = log10(max(amin, ref=1.0)) = 0  -> nothing to subtract

MAX_TILE_ROWS = 512              # frame-rows (MXU M dim) per grid step

# Optional bf16 MXU operands (v6e/v7x throughput; f32 accumulation kept).
# Default False so numerics match the torchaudio f32 reference.
USE_BF16_MXU = False


# ---- deterministic "parameters" ----------------------------------------------
def _hz_to_mel(f):
    return 2595.0 * np.log10(1.0 + f / 700.0)


def _mel_to_hz(m):
    return 700.0 * (10.0 ** (m / 2595.0) - 1.0)


def melscale_fbanks(n_freqs, f_min, f_max, n_mels, sample_rate):
    # torchaudio.functional.melscale_fbanks, htk scale, norm=None
    all_freqs = np.linspace(0.0, sample_rate / 2.0, n_freqs)
    m_pts = np.linspace(_hz_to_mel(f_min), _hz_to_mel(f_max), n_mels + 2)
    f_pts = _mel_to_hz(m_pts)
    f_diff = f_pts[1:] - f_pts[:-1]
    slopes = f_pts[None, :] - all_freqs[:, None]            # (n_freqs, n_mels+2)
    down = -slopes[:, :-2] / f_diff[:-1]
    up = slopes[:, 2:] / f_diff[1:]
    fb = np.maximum(0.0, np.minimum(down, up))
    return fb.astype(np.float32)                            # (n_freqs, n_mels)


def combined_dft_and_fb():
    # Hann(periodic)-windowed real-input DFT as ONE (n_fft, n_fft) matrix:
    #   cols [0..128]   -> real parts of bins 0..128
    #   cols [129..255] -> imag parts of bins 1..127 (imag of DC/Nyquist == 0)
    n = np.arange(N_FFT)[:, None].astype(np.float64)
    k = np.arange(N_FREQ)[None, :].astype(np.float64)
    ang = 2.0 * np.pi * n * k / N_FFT
    win = 0.5 * (1.0 - np.cos(2.0 * np.pi * np.arange(N_FFT) / N_FFT))
    dft_r = np.cos(ang) * win[:, None]                      # (n_fft, 129)
    dft_i = (-np.sin(ang)) * win[:, None]                   # (n_fft, 129)
    w = np.concatenate([dft_r, dft_i[:, 1:N_FREQ - 1]], axis=1).astype(np.float32)  # (256,256)

    # power[f] = re_f^2 + im_f^2  =>  mel = (Y*Y) @ fbc, with the fb row of each
    # frequency duplicated onto its matching imaginary column (exact).
    fb = melscale_fbanks(N_FREQ, F_MIN, F_MAX, N_MELS, SAMPLE_RATE)                 # (129,128)
    fbc = np.concatenate([fb, fb[1:N_FREQ - 1, :]], axis=0).astype(np.float32)      # (256,128)
    return w, fbc


# ---- glue: center (reflect) padding + framing --------------------------------
def frame_signal(x):
    # x: (B, T) -> frames: (B, n_frames, n_fft), matching torch.stft(center=True,
    # pad_mode='reflect', hop=HOP, win_length=n_fft).
    # hop == n_fft // 2, so frame f = [chunk_f | chunk_{f+1}] of 128-sample chunks:
    # two contiguous slices + one concat, no gather.
    B, T = x.shape
    pad = N_FFT // 2
    xp = jnp.pad(x, ((0, 0), (pad, pad)), mode="reflect")   # (B, T + 256)
    n_frames = 1 + T // HOP
    chunks = xp[:, :(n_frames + 1) * HOP].reshape(B, n_frames + 1, HOP)
    return jnp.concatenate([chunks[:, :-1, :], chunks[:, 1:, :]], axis=-1)  # (B, n_frames, 256)


# ---- Pallas kernel: the hot path ---------------------------------------------
def mel_db_kernel(frames_ref, w_ref, fbc_ref, out_ref, rowmax_ref):
    # Fused Hann-DFT: (TM, 256) @ (256, 256) -> [re | im], lane-dense, one MXU pass.
    y = jnp.dot(frames_ref[...], w_ref[...], preferred_element_type=jnp.float32)
    p = y * y                                                # squared re/im contributions
    # Folded mel filterbank: exact power -> mel projection, lane-dense 128 output.
    fbc = fbc_ref[...]
    mel = jnp.dot(p.astype(fbc.dtype), fbc, preferred_element_type=jnp.float32)
    # AmplitudeToDB (stype='power' -> multiplier=10); top_db clamp hoisted to the
    # wrapper so the time axis can be tiled.  Lane-dense (TM, 128) store.
    db = 10.0 * jnp.log10(jnp.maximum(mel, AMIN))
    out_ref[...] = db
    # Per-frame max (XLU cross-lane reduce, free slot) so the wrapper's top_db
    # reference max doesn't need to re-read the full dB array from HBM.
    rowmax_ref[...] = jnp.max(db, axis=-1, keepdims=True)


def _round_up(a, m):
    return (a + m - 1) // m * m


def random_stretch_melspectrogram(x, w, fbc):
    B, T = x.shape
    frames = frame_signal(x)                                 # (B, n_frames, 256)
    n_frames = frames.shape[1]
    rows = B * n_frames
    frames = frames.reshape(rows, N_FFT)

    # Row tiling: up to MAX_TILE_ROWS frame-rows per grid step (real MXU M
    # dimension), working set independent of audio length.
    num_tiles = pl.cdiv(rows, MAX_TILE_ROWS)
    tm = _round_up(pl.cdiv(rows, num_tiles), 8)
    rows_pad = num_tiles * tm
    if rows_pad != rows:
        frames = jnp.pad(frames, ((0, rows_pad - rows), (0, 0)))
    if USE_BF16_MXU:
        frames = frames.astype(jnp.bfloat16)

    db, rowmax = pl.pallas_call(
        mel_db_kernel,
        out_shape=(
            jax.ShapeDtypeStruct((rows_pad, N_MELS), jnp.float32),
            jax.ShapeDtypeStruct((rows_pad, 1), jnp.float32),
        ),
        grid_spec=pltpu.PrefetchScalarGridSpec(
            num_scalar_prefetch=0,
            grid=(num_tiles,),
            in_specs=[
                pl.BlockSpec((tm, N_FFT), lambda t: (t, 0)),
                pl.BlockSpec((N_FFT, N_FFT), lambda t: (0, 0)),   # resident, DMA'd once
                pl.BlockSpec((N_FFT, N_MELS), lambda t: (0, 0)),  # resident, DMA'd once
            ],
            out_specs=[
                pl.BlockSpec((tm, N_MELS), lambda t: (t, 0)),
                pl.BlockSpec((tm, 1), lambda t: (t, 0)),
            ],
        ),
        compiler_params=pltpu.CompilerParams(
            dimension_semantics=("parallel",)),
    )(frames, w, fbc)

    db = db[:rows].reshape(B, n_frames, N_MELS)
    # torchaudio AmplitudeToDB on a 3-D (B, n_mels, time) tensor treats the
    # leading dim as channels -> the top_db clamp uses the GLOBAL max of the
    # whole tensor.  (Padded rows produce exactly -100 dB = the floor, so they
    # can never dominate, but we slice them off anyway.)
    ref_max = jnp.max(rowmax[:rows])
    db = jnp.maximum(db, ref_max - TOP_DB)
    # Time-major -> torchaudio's (B, n_mels, n_frames) layout.
    return jnp.transpose(db, (0, 2, 1))


if __name__ == "__main__":
    key = jax.random.PRNGKey(0)
    B, T = 2, 2048
    x = jax.random.normal(key, (B, T), dtype=jnp.float32)

    w_np, fbc_np = combined_dft_and_fb()
    param_dtype = jnp.bfloat16 if USE_BF16_MXU else jnp.float32
    w = jnp.asarray(w_np, dtype=param_dtype)
    fbc = jnp.asarray(fbc_np, dtype=param_dtype)

    fn = jax.jit(random_stretch_melspectrogram)
    out = fn(x, w, fbc)
    jax.block_until_ready(out)
    assert out.shape == (B, N_MELS, 1 + T // HOP), out.shape
    assert bool(jnp.all(jnp.isfinite(out)))
    print("KERNEL_OK")
</pallas_src>

<mosaic_0001>
module attributes {stable_mosaic.version = 11 : i64} {
  func.func @mel_db_kernel(%arg0: i32, %arg1: memref<40x256xf32, #tpu.memory_space<vmem>>, %arg2: memref<256x256xf32, #tpu.memory_space<vmem>>, %arg3: memref<256x128xf32, #tpu.memory_space<vmem>>, %arg4: memref<40x128xf32, #tpu.memory_space<vmem>>, %arg5: memref<40x1xf32, #tpu.memory_space<vmem>>) attributes {dimension_semantics = [#tpu.dimension_semantics<parallel>], iteration_bounds = array<i64: 1>, scalar_prefetch = 0 : i64, scratch_operands = 0 : i64, tpu.core_type = #tpu.core_type<tc>, window_params = [{transform_indices = @transform_0, window_bounds = array<i64: 40, 256>}, {pipeline_mode = #tpu.pipeline_mode<synchronous>, transform_indices = @transform_1, window_bounds = array<i64: 256, 256>}, {pipeline_mode = #tpu.pipeline_mode<synchronous>, transform_indices = @transform_2, window_bounds = array<i64: 256, 128>}, {transform_indices = @transform_3, window_bounds = array<i64: 40, 128>}, {transform_indices = @transform_4, window_bounds = array<i64: 40, 1>}]} {
    %c0 = arith.constant 0 : index
    %c0_0 = arith.constant 0 : index
    %0 = vector.load %arg1[%c0, %c0_0] : memref<40x256xf32, #tpu.memory_space<vmem>>, vector<40x256xf32>
    %c0_1 = arith.constant 0 : index
    %c0_2 = arith.constant 0 : index
    %1 = vector.load %arg2[%c0_1, %c0_2] : memref<256x256xf32, #tpu.memory_space<vmem>>, vector<256x256xf32>
    %cst = arith.constant dense<0.000000e+00> : vector<40x256xf32>
    %2 = tpu.matmul %0, %1, %cst {dimension_numbers = #tpu.dot_dimension_numbers<[1], [0], [0], [1], [0, 0, 1, 1], [], []>} : vector<40x256xf32>, vector<256x256xf32>, vector<40x256xf32> -> vector<40x256xf32>
    %3 = arith.mulf %2, %2 : vector<40x256xf32>
    %c0_3 = arith.constant 0 : index
    %c0_4 = arith.constant 0 : index
    %4 = vector.load %arg3[%c0_3, %c0_4] : memref<256x128xf32, #tpu.memory_space<vmem>>, vector<256x128xf32>
    %cst_5 = arith.constant dense<0.000000e+00> : vector<40x128xf32>
    %5 = tpu.matmul %3, %4, %cst_5 {dimension_numbers = #tpu.dot_dimension_numbers<[1], [0], [0], [1], [0, 0, 1, 1], [], []>} : vector<40x256xf32>, vector<256x128xf32>, vector<40x128xf32> -> vector<40x128xf32>
    %cst_6 = arith.constant 1.000000e-10 : f32
    %6 = vector.broadcast %cst_6 : f32 to vector<40x128xf32>
    %7 = arith.maximumf %5, %6 : vector<40x128xf32>
    %8 = math.log %7 : vector<40x128xf32>
    %cst_7 = arith.constant 0.434294492 : f32
    %9 = vector.broadcast %cst_7 : f32 to vector<40x128xf32>
    %10 = arith.mulf %8, %9 : vector<40x128xf32>
    %cst_8 = arith.constant 1.000000e+01 : f32
    %11 = vector.broadcast %cst_8 : f32 to vector<40x128xf32>
    %12 = arith.mulf %11, %10 : vector<40x128xf32>
    %c0_9 = arith.constant 0 : index
    %c0_10 = arith.constant 0 : index
    %13 = vector.load %arg4[%c0_9, %c0_10] : memref<40x128xf32, #tpu.memory_space<vmem>>, vector<40x128xf32>
    tpu.vector_store %arg4[%c0_9, %c0_10], %12 {strides = array<i32>} : memref<40x128xf32, #tpu.memory_space<vmem>>, vector<40x128xf32>,
    %cst_11 = arith.constant dense<0xFF800000> : vector<40xf32>
    %14 = vector.multi_reduction <maximumf>, %12, %cst_11 [1] : vector<40x128xf32> to vector<40xf32>
    %15 = vector.shape_cast %14 : vector<40xf32> to vector<40x1xf32>
    %c0_12 = arith.constant 0 : index
    %c0_13 = arith.constant 0 : index
    %16 = vector.load %arg5[%c0_12, %c0_13] : memref<40x1xf32, #tpu.memory_space<vmem>>, vector<40x1xf32>
    tpu.vector_store %arg5[%c0_12, %c0_13], %15 {strides = array<i32>} : memref<40x1xf32, #tpu.memory_space<vmem>>, vector<40x1xf32>,
    return
  }
  func.func @transform_0(%arg0: i32) -> (i32, i32) {
    %c0_i32 = arith.constant 0 : i32
    %c0_i32_0 = arith.constant 0 : i32
    return %arg0, %c0_i32 : i32, i32
  }
  func.func @transform_1(%arg0: i32) -> (i32, i32) {
    %c0_i32 = arith.constant 0 : i32
    %c0_i32_0 = arith.constant 0 : i32
    %c0_i32_1 = arith.constant 0 : i32
    return %c0_i32, %c0_i32_0 : i32, i32
  }
  func.func @transform_2(%arg0: i32) -> (i32, i32) {
    %c0_i32 = arith.constant 0 : i32
    %c0_i32_0 = arith.constant 0 : i32
    %c0_i32_1 = arith.constant 0 : i32
    return %c0_i32, %c0_i32_0 : i32, i32
  }
  func.func @transform_3(%arg0: i32) -> (i32, i32) {
    %c0_i32 = arith.constant 0 : i32
    %c0_i32_0 = arith.constant 0 : i32
    return %arg0, %c0_i32 : i32, i32
  }
  func.func @transform_4(%arg0: i32) -> (i32, i32) {
    %c0_i32 = arith.constant 0 : i32
    %c0_i32_0 = arith.constant 0 : i32
    return %arg0, %c0_i32 : i32, i32
  }
}

</mosaic_0001>

<llo_original>
// kernel: random_stretch_melspectrogram.1
$region0: #{random_stretch_melspectrogram.1}
  #allocation0 [shape = 'u32[]', space=smem, size = 0x4, offset = 0x4, fixed_abs, tag = 'smem constant byte address 0x4 - core index']
  #allocation1 [shape = 'u32[72,128]{1,0:T(1,128)}', space=vmem, size = 0x9000, scoped, tag = 'internal scratch']
  %s0 = inlined_call_operand.vmem [shape: f32[40,256], index: 0, kind: input, shape index: {}]
  %s1 = inlined_call_operand.vmem [shape: f32[256,256], index: 1, kind: input, shape index: {}]
  %s2 = inlined_call_operand.vmem [shape: f32[256,128], index: 2, kind: input, shape index: {}]
  %s3 = inlined_call_operand.vmem [shape: f32[40,128], index: 3, kind: output, shape index: {0}]
  %s4 = inlined_call_operand.vmem [shape: f32[40,1], index: 4, kind: output, shape index: {1}]
  %5 = xla_tuple %s3, %s4
  %s6 = sld [smem:[#allocation0]]
  $region30: #{random_stretch_melspectrogram.1} parent=0
    _
  %s8 = ssub.s32 1, %s6
  %s9 = scalar_select 0, %s8, %s6
  // Predicated region
  $region2: #{random_stretch_melspectrogram.1} parent=0 // pred_check
    _
  $region3: #{random_stretch_melspectrogram.1} parent=0 // pred_check_branch
    %11 = sbr.rel (0) target = $region5
  $region4: #{random_stretch_melspectrogram.1} parent=0 // pred_region
    _
  $region5: #{random_stretch_melspectrogram.1} parent=0 // pred_fallthru
    _
  // Predicated region
  $region6: #{random_stretch_melspectrogram.1} parent=0 // pred_check
    _
  $region7: #{random_stretch_melspectrogram.1} parent=0 // pred_check_branch
    %13 = sbr.rel (0) target = $region9
  $region8: #{random_stretch_melspectrogram.1} parent=0 // pred_region
    _
  $region9: #{random_stretch_melspectrogram.1} parent=0 // pred_fallthru
    _
  // Predicated region
  $region10: #{random_stretch_melspectrogram.1} parent=0 // pred_check
    _
  $region11: #{random_stretch_melspectrogram.1} parent=0 // pred_check_branch
    %15 = sbr.rel (0) target = $region13
  $region12: #{random_stretch_melspectrogram.1} parent=0 // pred_region
    _
  $region13: #{random_stretch_melspectrogram.1} parent=0 // pred_fallthru
    _
  %v16 = vld [vmem:[%s0] sm:$0xff]
  %v17 = vld [vmem:[%s0 + $0x8] sm:$0xff]
  %v18 = vld [vmem:[%s0 + $0x10] sm:$0xff]
  %v19 = vld [vmem:[%s0 + $0x18] sm:$0xff]
  %v20 = vld [vmem:[%s0 + $0x20] sm:$0xff]
  %v21 = vld [vmem:[%s0 + $0x28] sm:$0xff]
  %v22 = vld [vmem:[%s0 + $0x30] sm:$0xff]
  %v23 = vld [vmem:[%s0 + $0x38] sm:$0xff]
  %v24 = vld [vmem:[%s0 + $0x40] sm:$0xff]
  %v25 = vld [vmem:[%s0 + $0x48] sm:$0xff]
  %v26 = vld [vmem:[%s1] sm:$0xff]
  %v27 = vld [vmem:[%s1 + $0x8] sm:$0xff]
  %v28 = vld [vmem:[%s1 + $0x10] sm:$0xff]
  %v29 = vld [vmem:[%s1 + $0x18] sm:$0xff]
  %v30 = vld [vmem:[%s1 + $0x20] sm:$0xff]
  %v31 = vld [vmem:[%s1 + $0x28] sm:$0xff]
  %v32 = vld [vmem:[%s1 + $0x30] sm:$0xff]
  %v33 = vld [vmem:[%s1 + $0x38] sm:$0xff]
  %v34 = vld [vmem:[%s1 + $0x40] sm:$0xff]
  %v35 = vld [vmem:[%s1 + $0x48] sm:$0xff]
  %v36 = vld [vmem:[%s1 + $0x50] sm:$0xff]
  %v37 = vld [vmem:[%s1 + $0x58] sm:$0xff]
  %v38 = vld [vmem:[%s1 + $0x60] sm:$0xff]
  %v39 = vld [vmem:[%s1 + $0x68] sm:$0xff]
  %v40 = vld [vmem:[%s1 + $0x70] sm:$0xff]
  %v41 = vld [vmem:[%s1 + $0x78] sm:$0xff]
  %v42 = vld [vmem:[%s1 + $0x80] sm:$0xff]
  %v43 = vld [vmem:[%s1 + $0x88] sm:$0xff]
  %v44 = vld [vmem:[%s1 + $0x90] sm:$0xff]
  %v45 = vld [vmem:[%s1 + $0x98] sm:$0xff]
  %v46 = vld [vmem:[%s1 + $0xa0] sm:$0xff]
  %v47 = vld [vmem:[%s1 + $0xa8] sm:$0xff]
  %v48 = vld [vmem:[%s1 + $0xb0] sm:$0xff]
  %v49 = vld [vmem:[%s1 + $0xb8] sm:$0xff]
  %v50 = vld [vmem:[%s1 + $0xc0] sm:$0xff]
  %v51 = vld [vmem:[%s1 + $0xc8] sm:$0xff]
  %v52 = vld [vmem:[%s1 + $0xd0] sm:$0xff]
  %v53 = vld [vmem:[%s1 + $0xd8] sm:$0xff]
  %v54 = vld [vmem:[%s1 + $0xe0] sm:$0xff]
  %v55 = vld [vmem:[%s1 + $0xe8] sm:$0xff]
  %v56 = vld [vmem:[%s1 + $0xf0] sm:$0xff]
  %v57 = vld [vmem:[%s1 + $0xf8] sm:$0xff]
  %v58 = vld [vmem:[%s1 + $0x100] sm:$0xff]
  %v59 = vld [vmem:[%s1 + $0x108] sm:$0xff]
  %v60 = vld [vmem:[%s1 + $0x110] sm:$0xff]
  %v61 = vld [vmem:[%s1 + $0x118] sm:$0xff]
  %v62 = vld [vmem:[%s1 + $0x120] sm:$0xff]
  %v63 = vld [vmem:[%s1 + $0x128] sm:$0xff]
  %v64 = vld [vmem:[%s1 + $0x130] sm:$0xff]
  %v65 = vld [vmem:[%s1 + $0x138] sm:$0xff]
  %v66 = vld [vmem:[%s1 + $0x140] sm:$0xff]
  %v67 = vld [vmem:[%s1 + $0x148] sm:$0xff]
  %v68 = vld [vmem:[%s1 + $0x150] sm:$0xff]
  %v69 = vld [vmem:[%s1 + $0x158] sm:$0xff]
  %v70 = vld [vmem:[%s1 + $0x160] sm:$0xff]
  %v71 = vld [vmem:[%s1 + $0x168] sm:$0xff]
  %v72 = vld [vmem:[%s1 + $0x170] sm:$0xff]
  %v73 = vld [vmem:[%s1 + $0x178] sm:$0xff]
  %v74 = vld [vmem:[%s1 + $0x180] sm:$0xff]
  %v75 = vld [vmem:[%s1 + $0x188] sm:$0xff]
  %v76 = vld [vmem:[%s1 + $0x190] sm:$0xff]
  %v77 = vld [vmem:[%s1 + $0x198] sm:$0xff]
  %v78 = vld [vmem:[%s1 + $0x1a0] sm:$0xff]
  %v79 = vld [vmem:[%s1 + $0x1a8] sm:$0xff]
  %v80 = vld [vmem:[%s1 + $0x1b0] sm:$0xff]
  %v81 = vld [vmem:[%s1 + $0x1b8] sm:$0xff]
  %v82 = vld [vmem:[%s1 + $0x1c0] sm:$0xff]
  %v83 = vld [vmem:[%s1 + $0x1c8] sm:$0xff]
  %v84 = vld [vmem:[%s1 + $0x1d0] sm:$0xff]
  %v85 = vld [vmem:[%s1 + $0x1d8] sm:$0xff]
  %v86 = vld [vmem:[%s1 + $0x1e0] sm:$0xff]
  %v87 = vld [vmem:[%s1 + $0x1e8] sm:$0xff]
  %v88 = vld [vmem:[%s1 + $0x1f0] sm:$0xff]
  %v89 = vld [vmem:[%s1 + $0x1f8] sm:$0xff]
  %90 = vmatpush.msra.mxu0 %v56
  %91 = vmatpush.msra.mxu0 %v54
  %92 = vmatpush.msra.mxu0 %v52
  %93 = vmatpush.msra.mxu0 %v50
  %94 = vmatpush.msra.mxu0 %v48
  %95 = vmatpush.msra.mxu0 %v46
  %96 = vmatpush.msra.mxu0 %v44
  %97 = vmatpush.msra.mxu0 %v42
  %98 = vmatpush.msra.mxu0 %v40
  %99 = vmatpush.msra.mxu0 %v38
  %100 = vmatpush.msra.mxu0 %v36
  %101 = vmatpush.msra.mxu0 %v34
  %102 = vmatpush.msra.mxu0 %v32
  %103 = vmatpush.msra.mxu0 %v30
  %104 = vmatpush.msra.mxu0 %v28
  %105 = vmatpush.msra.mxu0 %v26
  %106 = vmatmul.f32.gmra.mxu0 %v16
  %v107 = vpop.f32.mrf.mxu0
  %v108 = vadd.f32 0.0, %v107
  %109 = vmatmul.f32.gmra.mxu0 %v18
  %v110 = vpop.f32.mrf.mxu0
  %v111 = vadd.f32 0.0, %v110
  %112 = vmatmul.f32.gmra.mxu0 %v20
  %v113 = vpop.f32.mrf.mxu0
  %v114 = vadd.f32 0.0, %v113
  %115 = vmatmul.f32.gmra.mxu0 %v22
  %v116 = vpop.f32.mrf.mxu0
  %v117 = vadd.f32 0.0, %v116
  %118 = vmatmul.f32.gmra.mxu0 %v24
  %v119 = vpop.f32.mrf.mxu0
  %v120 = vadd.f32 0.0, %v119
  %121 = vdwg.mxu0
  %122 = vmatpush.msra.mxu0 %v88
  %123 = vmatpush.msra.mxu0 %v86
  %124 = vmatpush.msra.mxu0 %v84
  %125 = vmatpush.msra.mxu0 %v82
  %126 = vmatpush.msra.mxu0 %v80
  %127 = vmatpush.msra.mxu0 %v78
  %128 = vmatpush.msra.mxu0 %v76
  %129 = vmatpush.msra.mxu0 %v74
  %130 = vmatpush.msra.mxu0 %v72
  %131 = vmatpush.msra.mxu0 %v70
  %132 = vmatpush.msra.mxu0 %v68
  %133 = vmatpush.msra.mxu0 %v66
  %134 = vmatpush.msra.mxu0 %v64
  %135 = vmatpush.msra.mxu0 %v62
  %136 = vmatpush.msra.mxu0 %v60
  %137 = vmatpush.msra.mxu0 %v58
  %138 = vmatmul.f32.gmra.mxu0 %v17
  %v139 = vpop.f32.mrf.mxu0
  %v140 = vadd.f32 %v108, %v139
  %141 = vmatmul.f32.gmra.mxu0 %v19
  %v142 = vpop.f32.mrf.mxu0
  %v143 = vadd.f32 %v111, %v142
  %144 = vmatmul.f32.gmra.mxu0 %v21
  %v145 = vpop.f32.mrf.mxu0
  %v146 = vadd.f32 %v114, %v145
  %147 = vmatmul.f32.gmra.mxu0 %v23
  %v148 = vpop.f32.mrf.mxu0
  %v149 = vadd.f32 %v117, %v148
  %150 = vmatmul.f32.gmra.mxu0 %v25
  %v151 = vpop.f32.mrf.mxu0
  %v152 = vadd.f32 %v120, %v151
  %153 = vdwg.mxu0
  %154 = vmatpush.msra.mxu0 %v57
  %155 = vmatpush.msra.mxu0 %v55
  %156 = vmatpush.msra.mxu0 %v53
  %157 = vmatpush.msra.mxu0 %v51
  %158 = vmatpush.msra.mxu0 %v49
  %159 = vmatpush.msra.mxu0 %v47
  %160 = vmatpush.msra.mxu0 %v45
  %161 = vmatpush.msra.mxu0 %v43
  %162 = vmatpush.msra.mxu0 %v41
  %163 = vmatpush.msra.mxu0 %v39
  %164 = vmatpush.msra.mxu0 %v37
  %165 = vmatpush.msra.mxu0 %v35
  %166 = vmatpush.msra.mxu0 %v33
  %167 = vmatpush.msra.mxu0 %v31
  %168 = vmatpush.msra.mxu0 %v29
  %169 = vmatpush.msra.mxu0 %v27
  %170 = vmatmul.f32.gmra.mxu0 %v16
  %v171 = vpop.f32.mrf.mxu0
  %v172 = vadd.f32 0.0, %v171
  %173 = vmatmul.f32.gmra.mxu0 %v18
  %v174 = vpop.f32.mrf.mxu0
  %v175 = vadd.f32 0.0, %v174
  %176 = vmatmul.f32.gmra.mxu0 %v20
  %v177 = vpop.f32.mrf.mxu0
  %v178 = vadd.f32 0.0, %v177
  %179 = vmatmul.f32.gmra.mxu0 %v22
  %v180 = vpop.f32.mrf.mxu0
  %v181 = vadd.f32 0.0, %v180
  %182 = vmatmul.f32.gmra.mxu0 %v24
  %v183 = vpop.f32.mrf.mxu0
  %v184 = vadd.f32 0.0, %v183
  %185 = vdwg.mxu0
  %186 = vmatpush.msra.mxu0 %v89
  %187 = vmatpush.msra.mxu0 %v87
  %188 = vmatpush.msra.mxu0 %v85
  %189 = vmatpush.msra.mxu0 %v83
  %190 = vmatpush.msra.mxu0 %v81
  %191 = vmatpush.msra.mxu0 %v79
  %192 = vmatpush.msra.mxu0 %v77
  %193 = vmatpush.msra.mxu0 %v75
  %194 = vmatpush.msra.mxu0 %v73
  %195 = vmatpush.msra.mxu0 %v71
  %196 = vmatpush.msra.mxu0 %v69
  %197 = vmatpush.msra.mxu0 %v67
  %198 = vmatpush.msra.mxu0 %v65
  %199 = vmatpush.msra.mxu0 %v63
  %200 = vmatpush.msra.mxu0 %v61
  %201 = vmatpush.msra.mxu0 %v59
  %202 = vmatmul.f32.gmra.mxu0 %v17
  %v203 = vpop.f32.mrf.mxu0
  %v204 = vadd.f32 %v172, %v203
  %205 = vmatmul.f32.gmra.mxu0 %v19
  %v206 = vpop.f32.mrf.mxu0
  %v207 = vadd.f32 %v175, %v206
  %208 = vmatmul.f32.gmra.mxu0 %v21
  %v209 = vpop.f32.mrf.mxu0
  %v210 = vadd.f32 %v178, %v209
  %211 = vmatmul.f32.gmra.mxu0 %v23
  %v212 = vpop.f32.mrf.mxu0
  %v213 = vadd.f32 %v181, %v212
  %214 = vmatmul.f32.gmra.mxu0 %v25
  %v215 = vpop.f32.mrf.mxu0
  %v216 = vadd.f32 %v184, %v215
  %217 = vdwg.mxu0
  %v218 = vmul.f32 %v140, %v140
  %v219 = vmul.f32 %v204, %v204
  %v220 = vmul.f32 %v143, %v143
  %v221 = vmul.f32 %v207, %v207
  %v222 = vmul.f32 %v146, %v146
  %v223 = vmul.f32 %v210, %v210
  %v224 = vmul.f32 %v149, %v149
  %v225 = vmul.f32 %v213, %v213
  %v226 = vmul.f32 %v152, %v152
  %v227 = vmul.f32 %v216, %v216
  %v228 = vld [vmem:[%s2] sm:$0xff]
  %v229 = vld [vmem:[%s2 + $0x8] sm:$0xff]
  %v230 = vld [vmem:[%s2 + $0x10] sm:$0xff]
  %v231 = vld [vmem:[%s2 + $0x18] sm:$0xff]
  %v232 = vld [vmem:[%s2 + $0x20] sm:$0xff]
  %v233 = vld [vmem:[%s2 + $0x28] sm:$0xff]
  %v234 = vld [vmem:[%s2 + $0x30] sm:$0xff]
  %v235 = vld [vmem:[%s2 + $0x38] sm:$0xff]
  %v236 = vld [vmem:[%s2 + $0x40] sm:$0xff]
  %v237 = vld [vmem:[%s2 + $0x48] sm:$0xff]
  %v238 = vld [vmem:[%s2 + $0x50] sm:$0xff]
  %v239 = vld [vmem:[%s2 + $0x58] sm:$0xff]
  %v240 = vld [vmem:[%s2 + $0x60] sm:$0xff]
  %v241 = vld [vmem:[%s2 + $0x68] sm:$0xff]
  %v242 = vld [vmem:[%s2 + $0x70] sm:$0xff]
  %v243 = vld [vmem:[%s2 + $0x78] sm:$0xff]
  %v244 = vld [vmem:[%s2 + $0x80] sm:$0xff]
  %v245 = vld [vmem:[%s2 + $0x88] sm:$0xff]
  %v246 = vld [vmem:[%s2 + $0x90] sm:$0xff]
  %v247 = vld [vmem:[%s2 + $0x98] sm:$0xff]
  %v248 = vld [vmem:[%s2 + $0xa0] sm:$0xff]
  %v249 = vld [vmem:[%s2 + $0xa8] sm:$0xff]
  %v250 = vld [vmem:[%s2 + $0xb0] sm:$0xff]
  %v251 = vld [vmem:[%s2 + $0xb8] sm:$0xff]
  %v252 = vld [vmem:[%s2 + $0xc0] sm:$0xff]
  %v253 = vld [vmem:[%s2 + $0xc8] sm:$0xff]
  %v254 = vld [vmem:[%s2 + $0xd0] sm:$0xff]
  %v255 = vld [vmem:[%s2 + $0xd8] sm:$0xff]
  %v256 = vld [vmem:[%s2 + $0xe0] sm:$0xff]
  %v257 = vld [vmem:[%s2 + $0xe8] sm:$0xff]
  %v258 = vld [vmem:[%s2 + $0xf0] sm:$0xff]
  %v259 = vld [vmem:[%s2 + $0xf8] sm:$0xff]
  %260 = vmatpush.msra.mxu0 %v243
  %261 = vmatpush.msra.mxu0 %v242
  %262 = vmatpush.msra.mxu0 %v241
  %263 = vmatpush.msra.mxu0 %v240
  %264 = vmatpush.msra.mxu0 %v239
  %265 = vmatpush.msra.mxu0 %v238
  %266 = vmatpush.msra.mxu0 %v237
  %267 = vmatpush.msra.mxu0 %v236
  %268 = vmatpush.msra.mxu0 %v235
  %269 = vmatpush.msra.mxu0 %v234
  %270 = vmatpush.msra.mxu0 %v233
  %271 = vmatpush.msra.mxu0 %v232
  %272 = vmatpush.msra.mxu0 %v231
  %273 = vmatpush.msra.mxu0 %v230
  %274 = vmatpush.msra.mxu0 %v229
  %275 = vmatpush.msra.mxu0 %v228
  %276 = vmatmul.f32.gmra.mxu0 %v218
  %v277 = vpop.f32.mrf.mxu0
  %v278 = vadd.f32 0.0, %v277
  %279 = vmatmul.f32.gmra.mxu0 %v220
  %v280 = vpop.f32.mrf.mxu0
  %v281 = vadd.f32 0.0, %v280
  %282 = vmatmul.f32.gmra.mxu0 %v222
  %v283 = vpop.f32.mrf.mxu0
  %v284 = vadd.f32 0.0, %v283
  %285 = vmatmul.f32.gmra.mxu0 %v224
  %v286 = vpop.f32.mrf.mxu0
  %v287 = vadd.f32 0.0, %v286
  %288 = vmatmul.f32.gmra.mxu0 %v226
  %v289 = vpop.f32.mrf.mxu0
  %v290 = vadd.f32 0.0, %v289
  %291 = vdwg.mxu0
  %292 = vmatpush.msra.mxu0 %v259
  %293 = vmatpush.msra.mxu0 %v258
  %294 = vmatpush.msra.mxu0 %v257
  %295 = vmatpush.msra.mxu0 %v256
  %296 = vmatpush.msra.mxu0 %v255
  %297 = vmatpush.msra.mxu0 %v254
  %298 = vmatpush.msra.mxu0 %v253
  %299 = vmatpush.msra.mxu0 %v252
  %300 = vmatpush.msra.mxu0 %v251
  %301 = vmatpush.msra.mxu0 %v250
  %302 = vmatpush.msra.mxu0 %v249
  %303 = vmatpush.msra.mxu0 %v248
  %304 = vmatpush.msra.mxu0 %v247
  %305 = vmatpush.msra.mxu0 %v246
  %306 = vmatpush.msra.mxu0 %v245
  %307 = vmatpush.msra.mxu0 %v244
  %308 = vmatmul.f32.gmra.mxu0 %v219
  %v309 = vpop.f32.mrf.mxu0
  %v310 = vadd.f32 %v278, %v309
  %311 = vmatmul.f32.gmra.mxu0 %v221
  %v312 = vpop.f32.mrf.mxu0
  %v313 = vadd.f32 %v281, %v312
  %314 = vmatmul.f32.gmra.mxu0 %v223
  %v315 = vpop.f32.mrf.mxu0
  %v316 = vadd.f32 %v284, %v315
  %317 = vmatmul.f32.gmra.mxu0 %v225
  %v318 = vpop.f32.mrf.mxu0
  %v319 = vadd.f32 %v287, %v318
  %320 = vmatmul.f32.gmra.mxu0 %v227
  %v321 = vpop.f32.mrf.mxu0
  %v322 = vadd.f32 %v290, %v321
  %323 = vdwg.mxu0
  %v324 = vmax.f32 %v310, 1e-10
  %v325 = vmax.f32 %v313, 1e-10
  %v326 = vmax.f32 %v316, 1e-10
  %v327 = vmax.f32 %v319, 1e-10
  %v328 = vmax.f32 %v322, 1e-10
  %v329 = vlog2.pop %v324
  %v330 = vmul.f32 %v329, 0.6931472
  %v331 = vlog2.pop %v325
  %v332 = vmul.f32 %v331, 0.6931472
  %v333 = vlog2.pop %v326
  %v334 = vmul.f32 %v333, 0.6931472
  %v335 = vlog2.pop %v327
  %v336 = vmul.f32 %v335, 0.6931472
  %v337 = vlog2.pop %v328
  %v338 = vmul.f32 %v337, 0.6931472
  %v339 = vmul.f32 %v330, 0.4342945
  %v340 = vmul.f32 %v332, 0.4342945
  %v341 = vmul.f32 %v334, 0.4342945
  %v342 = vmul.f32 %v336, 0.4342945
  %v343 = vmul.f32 %v338, 0.4342945
  %v344 = vmul.f32 %v339, 10.0
  %v345 = vmul.f32 %v340, 10.0
  %v346 = vmul.f32 %v341, 10.0
  %v347 = vmul.f32 %v342, 10.0
  %v348 = vmul.f32 %v343, 10.0
  %349 = vst [vmem:[%s3] sm:$0xff] %v344
  %350 = vst [vmem:[%s3 + $0x8] sm:$0xff] %v345
  %351 = vst [vmem:[%s3 + $0x10] sm:$0xff] %v346
  %352 = vst [vmem:[%s3 + $0x18] sm:$0xff] %v347
  %353 = vst [vmem:[%s3 + $0x20] sm:$0xff] %v348
  %354 = vmax.xlane.f32.xlu0 %v344
  %v355 = vpop.xlane.xlu0 %354
  %356 = vmax.xlane.f32.xlu0 %v345
  %v357 = vpop.xlane.xlu0 %356
  %358 = vmax.xlane.f32.xlu0 %v346
  %v359 = vpop.xlane.xlu0 %358
  %360 = vmax.xlane.f32.xlu0 %v347
  %v361 = vpop.xlane.xlu0 %360
  %362 = vmax.xlane.f32.xlu0 %v348
  %v363 = vpop.xlane.xlu0 %362
  %vm364 = vcmask 7168
  %365 = vst.msk [vmem:[%s4] sm:$0xff] %vm364, %v355
  %366 = vst.msk [vmem:[%s4 + $0x8] sm:$0xff] %vm364, %v357
  %367 = vst.msk [vmem:[%s4 + $0x10] sm:$0xff] %vm364, %v359
  %368 = vst.msk [vmem:[%s4 + $0x18] sm:$0xff] %vm364, %v361
  %369 = vst.msk [vmem:[%s4 + $0x20] sm:$0xff] %vm364, %v363
  // Predicated region
  $region14: #{random_stretch_melspectrogram.1} parent=0 // pred_check
    _
  $region15: #{random_stretch_melspectrogram.1} parent=0 // pred_check_branch
    %371 = sbr.rel (0) target = $region17
  $region16: #{random_stretch_melspectrogram.1} parent=0 // pred_region
    _
  $region17: #{random_stretch_melspectrogram.1} parent=0 // pred_fallthru
    _
  // Predicated region
  $region18: #{random_stretch_melspectrogram.1} parent=0 // pred_check
    _
  $region19: #{random_stretch_melspectrogram.1} parent=0 // pred_check_branch
    %373 = sbr.rel (0) target = $region21
  $region20: #{random_stretch_melspectrogram.1} parent=0 // pred_region
    _
  $region21: #{random_stretch_melspectrogram.1} parent=0 // pred_fallthru
    _
  // Predicated region
  $region22: #{random_stretch_melspectrogram.1} parent=0 // pred_check
    _
  $region23: #{random_stretch_melspectrogram.1} parent=0 // pred_check_branch
    %375 = sbr.rel (0) target = $region25
  $region24: #{random_stretch_melspectrogram.1} parent=0 // pred_region
    _
  $region25: #{random_stretch_melspectrogram.1} parent=0 // pred_fallthru
    _
  // Predicated region
  $region26: #{random_stretch_melspectrogram.1} parent=0 // pred_check
    _
  $region27: #{random_stretch_melspectrogram.1} parent=0 // pred_check_branch
    %377 = sbr.rel (0) target = $region29
  $region28: #{random_stretch_melspectrogram.1} parent=0 // pred_region
    _
  $region29: #{random_stretch_melspectrogram.1} parent=0 // pred_fallthru
    _

</llo_original>
